<compile_context>
chip_gen: v6e
topology: v6e:2x2x1
jax: 0.10.0
libtpu: 0.0.40
codegen_flags: <defaults>
</compile_context>

<pallas_src>
import functools
import math

import jax
import jax.numpy as jnp
from jax.experimental import pallas as pl
from jax.experimental.pallas import tpu as pltpu

_LANES = 128
_SUBLANES = 8
# 8192 x 128 f32 block = 4 MiB per input; x2 inputs x2 pipeline buffers = 16 MiB.
_DEFAULT_MAX_BLOCK_ROWS = 8192
# Explicit scoped-VMEM request: fits the 16 MiB working set with headroom on
# v5e/v6e (128 MiB physical) and stays within v7x's 64 MiB physical VMEM.
_VMEM_LIMIT_BYTES = 32 * 1024 * 1024
# Above this many rows, force >= 2 grid steps so both v7x TensorCores get work.
_MIN_ROWS_FOR_SPLIT = 2048


def _nan_aware_mse_kernel(pred_ref, tgt_ref, sum_ref, cnt_ref, *,
                          no_data_value, out_rows, tail_rows, has_tail):
    pred = pred_ref[...].astype(jnp.float32)
    tgt = tgt_ref[...].astype(jnp.float32)
    nodata = jnp.float32(no_data_value)

    def partials(valid):
        mask = valid.astype(jnp.float32)
        diff = jnp.where(valid, pred - tgt, 0.0)
        sq = diff * diff
        if out_rows == _SUBLANES:
            # Fold the block rows down to a single (8, lanes) row-group:
            # pure VALU adds of whole vregs, full unmasked store.
            s = jnp.sum(sq.reshape(-1, _SUBLANES, sq.shape[-1]), axis=0)
            c = jnp.sum(mask.reshape(-1, _SUBLANES, mask.shape[-1]), axis=0)
        else:
            # Single-block path with rows not a multiple of 8.
            s = jnp.sum(sq, axis=0, keepdims=True)
            c = jnp.sum(mask, axis=0, keepdims=True)
        return s, c

    # Hot path: full blocks do only cast / compare / sub / select / mul / add.
    s, c = partials(tgt != nodata)
    sum_ref[...] = s
    cnt_ref[...] = c

    if has_tail:
        # Only the last grid block reads past the logical row count; redo it
        # with a row mask against the *static* tail length and overwrite.
        @pl.when(pl.program_id(0) == pl.num_programs(0) - 1)
        def _():
            row_ids = jax.lax.broadcasted_iota(jnp.int32, pred.shape, 0)
            valid_t = jnp.logical_and(tgt != nodata, row_ids < tail_rows)
            s_t, c_t = partials(valid_t)
            sum_ref[...] = s_t
            cnt_ref[...] = c_t


def _choose_view(predictions, target, target_no_data_value, max_block_rows):
    """Lane-friendly 2-D views of both tensors, copy-free whenever possible."""
    n = math.prod(predictions.shape)
    if n % _LANES == 0:
        rows = n // _LANES
        return predictions.reshape(rows, _LANES), target.reshape(rows, _LANES)
    # Ragged element count: keep the original trailing dim as the lane dim so
    # the reshape stays a free bitcast (no full-tensor pad/copy in HBM).
    if predictions.ndim >= 2:
        last = predictions.shape[-1]
        last_pad = -(-last // _LANES) * _LANES
        if last_pad * _SUBLANES <= max_block_rows * _LANES:   # block fits VMEM budget
            lead = n // last
            return predictions.reshape(lead, last), target.reshape(lead, last)
    # Pathological ragged shape (1-D ragged or huge unaligned last dim): pad the
    # tail with the sentinel so padded lanes are masked out.  Rare; costs one copy.
    pad = (-n) % _LANES
    pred_flat = jnp.pad(jnp.ravel(predictions), (0, pad))
    tgt_flat = jnp.pad(jnp.ravel(target), (0, pad),
                       constant_values=float(target_no_data_value))
    rows = (n + pad) // _LANES
    return pred_flat.reshape(rows, _LANES), tgt_flat.reshape(rows, _LANES)


def nan_aware_mse_loss(predictions, target, target_no_data_value, *,
                       max_block_rows=_DEFAULT_MAX_BLOCK_ROWS):
    """NanAwareLoss(nn.MSELoss(), target_no_data_value) forward pass."""
    assert predictions.shape == target.shape
    assert max_block_rows >= _SUBLANES and max_block_rows % _SUBLANES == 0

    n = math.prod(predictions.shape)
    if n == 0:
        # TODO(synk): the PyTorch module also emits a logger.warning here;
        # only the returned 0.0 value is reproduced.
        return jnp.float32(0.0)

    pred2d, tgt2d = _choose_view(predictions, target, target_no_data_value,
                                 max_block_rows)
    rows, lanes = pred2d.shape
    lanes_pad = -(-lanes // _LANES) * _LANES

    # Budget block rows so one block stays ~max_block_rows*128 elements even
    # when the lane dim is narrower/wider than 128 (VMEM layout pads lanes).
    rows_budget = max(_SUBLANES,
                      (max_block_rows * _LANES // lanes_pad)
                      // _SUBLANES * _SUBLANES)

    if rows <= rows_budget:
        if rows >= _MIN_ROWS_FOR_SPLIT:
            # Guarantee >= 2 grid steps so v7x's two TensorCores both get work.
            half = (rows + 1) // 2
            block_rows = -(-half // _SUBLANES) * _SUBLANES
        else:
            block_rows = rows            # block == full extent: layout-legal
    else:
        block_rows = rows_budget         # multiple of 8 -> (8, 128) rule holds

    num_blocks = -(-rows // block_rows)
    tail_rows = rows - (num_blocks - 1) * block_rows     # static
    has_tail = tail_rows != block_rows
    out_rows = _SUBLANES if block_rows % _SUBLANES == 0 else 1

    kernel = functools.partial(
        _nan_aware_mse_kernel,
        no_data_value=float(target_no_data_value),
        out_rows=out_rows,
        tail_rows=tail_rows,
        has_tail=has_tail,
    )

    sums, counts = pl.pallas_call(
        kernel,
        out_shape=(
            jax.ShapeDtypeStruct((num_blocks * out_rows, lanes), jnp.float32),
            jax.ShapeDtypeStruct((num_blocks * out_rows, lanes), jnp.float32),
        ),
        grid_spec=pltpu.PrefetchScalarGridSpec(
            num_scalar_prefetch=0,
            grid=(num_blocks,),
            in_specs=[
                pl.BlockSpec((block_rows, lanes), lambda i: (i, 0)),
                pl.BlockSpec((block_rows, lanes), lambda i: (i, 0)),
            ],
            out_specs=(
                pl.BlockSpec((out_rows, lanes), lambda i: (i, 0)),
                pl.BlockSpec((out_rows, lanes), lambda i: (i, 0)),
            ),
        ),
        compiler_params=pltpu.CompilerParams(
            dimension_semantics=("parallel",),
            vmem_limit_bytes=_VMEM_LIMIT_BYTES,
        ),
    )(pred2d, tgt2d)

    # Tiny cross-lane / cross-block fold of the f32 partials.  Counts stay in
    # f32 (exact per block; avoids int32 overflow for > 2^31 valid elements,
    # with at most ~2^-24 relative error on the denominator for huge tensors).
    total_sq = jnp.sum(sums)
    total_cnt = jnp.sum(counts)
    return jnp.where(total_cnt > 0,
                     total_sq / jnp.maximum(total_cnt, 1.0),
                     jnp.float32(0.0))


def _reference(predictions, target, target_no_data_value):
    valid = target != target_no_data_value
    cnt = jnp.sum(valid)
    diff = jnp.where(valid, predictions.astype(jnp.float32)
                     - target.astype(jnp.float32), 0.0)
    return jnp.where(cnt > 0,
                     jnp.sum(diff * diff) / jnp.maximum(cnt, 1).astype(jnp.float32),
                     jnp.float32(0.0))


if __name__ == "__main__":
    key = jax.random.PRNGKey(0)
    kp, kt, km = jax.random.split(key, 3)

    B, C, H, W = 2, 4, 16, 16       # NCHW
    target_no_data_value = -1

    predictions = jax.random.normal(kp, (B, C, H, W), dtype=jnp.float32)
    target = jax.random.normal(kt, (B, C, H, W), dtype=jnp.float32)
    # Sprinkle no-data values into ~25% of the target.
    nodata_mask = jax.random.uniform(km, (B, C, H, W)) < 0.25
    target = jnp.where(nodata_mask, jnp.float32(target_no_data_value), target)

    ref = _reference(predictions, target, jnp.float32(target_no_data_value))

    # 1) Single-block aligned path.
    loss = jax.block_until_ready(
        nan_aware_mse_loss(predictions, target, target_no_data_value))
    assert jnp.allclose(loss, ref, rtol=1e-5, atol=1e-6), (loss, ref)

    # 2) Degenerate case: all targets are no-data -> 0.0 loss.
    all_nodata = jnp.full((B, C, H, W), float(target_no_data_value), jnp.float32)
    zero_loss = jax.block_until_ready(
        nan_aware_mse_loss(predictions, all_nodata, target_no_data_value))
    assert float(zero_loss) == 0.0

    # 3) Multi-block aligned path (small max_block_rows to force grid > 1).
    loss_mb = jax.block_until_ready(
        nan_aware_mse_loss(predictions, target, target_no_data_value,
                           max_block_rows=8))
    assert jnp.allclose(loss_mb, ref, rtol=1e-5, atol=1e-6), (loss_mb, ref)

    # 4) Ragged n (not a multiple of 128): copy-free (lead, last-dim) view,
    #    multiple blocks, masked partial last block.
    kp2, kt2, km2 = jax.random.split(jax.random.PRNGKey(1), 3)
    p2 = jax.random.normal(kp2, (3, 5, 7, 11), dtype=jnp.float32)
    t2 = jax.random.normal(kt2, (3, 5, 7, 11), dtype=jnp.float32)
    t2 = jnp.where(jax.random.uniform(km2, t2.shape) < 0.25,
                   jnp.float32(target_no_data_value), t2)
    ref2 = _reference(p2, t2, jnp.float32(target_no_data_value))
    loss2 = jax.block_until_ready(
        nan_aware_mse_loss(p2, t2, target_no_data_value, max_block_rows=8))
    assert jnp.allclose(loss2, ref2, rtol=1e-5, atol=1e-6), (loss2, ref2)

    # 5) Aligned but rows not a multiple of 8 (single block, 1-row partials).
    kp3, kt3, km3 = jax.random.split(jax.random.PRNGKey(2), 3)
    p3 = jax.random.normal(kp3, (3, 128), dtype=jnp.float32)
    t3 = jax.random.normal(kt3, (3, 128), dtype=jnp.float32)
    t3 = jnp.where(jax.random.uniform(km3, t3.shape) < 0.25,
                   jnp.float32(target_no_data_value), t3)
    ref3 = _reference(p3, t3, jnp.float32(target_no_data_value))
    loss3 = jax.block_until_ready(
        nan_aware_mse_loss(p3, t3, target_no_data_value))
    assert jnp.allclose(loss3, ref3, rtol=1e-5, atol=1e-6), (loss3, ref3)

    # 6) 1-D ragged input -> rare padded fallback path.
    kp4, kt4, km4 = jax.random.split(jax.random.PRNGKey(3), 3)
    p4 = jax.random.normal(kp4, (200,), dtype=jnp.float32)
    t4 = jax.random.normal(kt4, (200,), dtype=jnp.float32)
    t4 = jnp.where(jax.random.uniform(km4, t4.shape) < 0.25,
                   jnp.float32(target_no_data_value), t4)
    ref4 = _reference(p4, t4, jnp.float32(target_no_data_value))
    loss4 = jax.block_until_ready(
        nan_aware_mse_loss(p4, t4, target_no_data_value))
    assert jnp.allclose(loss4, ref4, rtol=1e-5, atol=1e-6), (loss4, ref4)

    # 7) bf16 inputs stay bf16 in HBM; kernel upcasts to f32 on the VPU.
    pb = predictions.astype(jnp.bfloat16)
    tb = target.astype(jnp.bfloat16)
    refb = _reference(pb, tb, jnp.float32(target_no_data_value))
    lossb = jax.block_until_ready(
        nan_aware_mse_loss(pb, tb, target_no_data_value))
    assert jnp.allclose(lossb, refb, rtol=1e-4, atol=1e-5), (lossb, refb)

    print("KERNEL_OK")
</pallas_src>

<mosaic_0001>
module attributes {stable_mosaic.version = 11 : i64} {
  func.func @_nan_aware_mse_kernel(%arg0: i32, %arg1: memref<16x128xf32, #tpu.memory_space<vmem>>, %arg2: memref<16x128xf32, #tpu.memory_space<vmem>>, %arg3: memref<8x128xf32, #tpu.memory_space<vmem>>, %arg4: memref<8x128xf32, #tpu.memory_space<vmem>>) attributes {dimension_semantics = [#tpu.dimension_semantics<parallel>], iteration_bounds = array<i64: 1>, scalar_prefetch = 0 : i64, scratch_operands = 0 : i64, tpu.core_type = #tpu.core_type<tc>, window_params = [{transform_indices = @transform_0, window_bounds = array<i64: 16, 128>}, {transform_indices = @transform_1, window_bounds = array<i64: 16, 128>}, {transform_indices = @transform_2, window_bounds = array<i64: 8, 128>}, {transform_indices = @transform_3, window_bounds = array<i64: 8, 128>}]} {
    %c0 = arith.constant 0 : index
    %c0_0 = arith.constant 0 : index
    %0 = vector.load %arg1[%c0, %c0_0] : memref<16x128xf32, #tpu.memory_space<vmem>>, vector<16x128xf32>
    %c0_1 = arith.constant 0 : index
    %c0_2 = arith.constant 0 : index
    %1 = vector.load %arg2[%c0_1, %c0_2] : memref<16x128xf32, #tpu.memory_space<vmem>>, vector<16x128xf32>
    %cst = arith.constant -1.000000e+00 : f32
    %2 = vector.broadcast %cst : f32 to vector<16x128xf32>
    %3 = arith.cmpf one, %1, %2 : vector<16x128xf32>
    %4 = arith.extui %3 : vector<16x128xi1> to vector<16x128xi32>
    %5 = arith.sitofp %4 : vector<16x128xi32> to vector<16x128xf32>
    %6 = arith.subf %0, %1 : vector<16x128xf32>
    %cst_3 = arith.constant 0.000000e+00 : f32
    %7 = vector.broadcast %cst_3 : f32 to vector<16x128xf32>
    %8 = arith.select %3, %6, %7 : vector<16x128xi1>, vector<16x128xf32>
    %9 = arith.mulf %8, %8 : vector<16x128xf32>
    %10 = vector.shape_cast %9 : vector<16x128xf32> to vector<2x8x128xf32>
    %cst_4 = arith.constant dense<0.000000e+00> : vector<8x128xf32>
    %11 = vector.multi_reduction <add>, %10, %cst_4 [0] : vector<2x8x128xf32> to vector<8x128xf32>
    %12 = vector.shape_cast %5 : vector<16x128xf32> to vector<2x8x128xf32>
    %cst_5 = arith.constant dense<0.000000e+00> : vector<8x128xf32>
    %13 = vector.multi_reduction <add>, %12, %cst_5 [0] : vector<2x8x128xf32> to vector<8x128xf32>
    %c0_6 = arith.constant 0 : index
    %c0_7 = arith.constant 0 : index
    %14 = vector.load %arg3[%c0_6, %c0_7] : memref<8x128xf32, #tpu.memory_space<vmem>>, vector<8x128xf32>
    tpu.vector_store %arg3[%c0_6, %c0_7], %11 {strides = array<i32>} : memref<8x128xf32, #tpu.memory_space<vmem>>, vector<8x128xf32>,
    %c0_8 = arith.constant 0 : index
    %c0_9 = arith.constant 0 : index
    %15 = vector.load %arg4[%c0_8, %c0_9] : memref<8x128xf32, #tpu.memory_space<vmem>>, vector<8x128xf32>
    tpu.vector_store %arg4[%c0_8, %c0_9], %13 {strides = array<i32>} : memref<8x128xf32, #tpu.memory_space<vmem>>, vector<8x128xf32>,
    return
  }
  func.func @transform_0(%arg0: i32) -> (i32, i32) {
    %c0_i32 = arith.constant 0 : i32
    %c0_i32_0 = arith.constant 0 : i32
    return %arg0, %c0_i32 : i32, i32
  }
  func.func @transform_1(%arg0: i32) -> (i32, i32) {
    %c0_i32 = arith.constant 0 : i32
    %c0_i32_0 = arith.constant 0 : i32
    return %arg0, %c0_i32 : i32, i32
  }
  func.func @transform_2(%arg0: i32) -> (i32, i32) {
    %c0_i32 = arith.constant 0 : i32
    %c0_i32_0 = arith.constant 0 : i32
    return %arg0, %c0_i32 : i32, i32
  }
  func.func @transform_3(%arg0: i32) -> (i32, i32) {
    %c0_i32 = arith.constant 0 : i32
    %c0_i32_0 = arith.constant 0 : i32
    return %arg0, %c0_i32 : i32, i32
  }
}

</mosaic_0001>

<llo_original>
// kernel: tpu_custom_call.1
$region0: #{tpu_custom_call.1}
  #allocation0 [shape = 'u32[]', space=smem, size = 0x4, offset = 0x4, fixed_abs, tag = 'smem constant byte address 0x4 - core index']
  #allocation1 [shape = 'u32[144,128]{1,0:T(1,128)}', space=vmem, size = 0x12000, scoped, tag = 'internal scratch']
  %s0 = inlined_call_operand.hbm [shape: f32[16,128], index: 0, kind: input, shape index: {}]
  %s1 = inlined_call_operand.hbm [shape: f32[16,128], index: 1, kind: input, shape index: {}]
  %s2 = inlined_call_operand.hbm [shape: f32[8,128], index: 2, kind: output, shape index: {0}]
  %s3 = inlined_call_operand.hbm [shape: f32[8,128], index: 3, kind: output, shape index: {1}]
  %4 = xla_tuple %s2, %s3
  %s5 = sld [smem:[#allocation0]]
  $region34: #{tpu_custom_call.1} parent=0
    _
  %s7 = ssub.s32 1, %s5
  %s8 = scalar_select 0, %s7, %s5
  $region1: #{tpu_custom_call.1} parent=0
    #allocation2 [shape = 'u8[8192]{0}', space=vmem, size = 0x2000, scoped, tag = 'input window, operand 0, single buffered']
    #allocation3 [shape = 's32[1]{0}', space=sflag, size = 0x4, scoped, tag = 'scoped memory for tpu_custom_call.1']
    #allocation4 [shape = 's32[1]{0}', space=sflag, size = 0x4, scoped, tag = 'scoped memory for tpu_custom_call.1']
    #allocation5 [shape = 'u8[8192]{0}', space=vmem, size = 0x2000, scoped, tag = 'input window, operand 1, single buffered']
    #allocation6 [shape = 's32[1]{0}', space=sflag, size = 0x4, scoped, tag = 'scoped memory for tpu_custom_call.1']
    #allocation7 [shape = 'u8[4096]{0}', space=vmem, size = 0x1000, scoped, tag = 'output window, operand 0, single buffered']
    #allocation8 [shape = 'u8[4096]{0}', space=vmem, size = 0x1000, scoped, tag = 'output window, operand 1, single buffered']
    #allocation9 [shape = 's32[1]{0}', space=sflag, size = 0x4, scoped, tag = 'scoped memory for tpu_custom_call.1']
    %9 = vsyncpa [#allocation3], 0
    %10 = vsyncpa [#allocation6], 0
    %11 = vsyncpa [#allocation4], 0
    %12 = vsyncpa [#allocation9], 0
    // Predicated region
    $region2: #{tpu_custom_call.1} parent=1 // pred_check
      _
    $region3: #{tpu_custom_call.1} parent=1 // pred_check_branch
      %14 = sbr.rel (0) target = $region5
    $region4: #{tpu_custom_call.1} parent=1 // pred_region
      %s16 = ssub.s32 256, 256
      %17 = vsyncadd [#allocation3], %s16
      %s18 = sshll.u32 [#allocation2], 4
      %s19 = int_to_ptr.vmem [resolvable:$true] %s18
      %24 = dma.hbm_to_vmem [thread:$0]  %s0, 256, %s19, [#allocation3], 128, 128, 8
    $region5: #{tpu_custom_call.1} parent=1 // pred_fallthru
      _
    // Predicated region
    $region6: #{tpu_custom_call.1} parent=1 // pred_check
      _
    $region7: #{tpu_custom_call.1} parent=1 // pred_check_branch
      %26 = sbr.rel (0) target = $region9
    $region8: #{tpu_custom_call.1} parent=1 // pred_region
      %s28 = ssub.s32 256, 256
      %29 = vsyncadd [#allocation6], %s28
      %s30 = sshll.u32 [#allocation5], 4
      %s31 = int_to_ptr.vmem [resolvable:$true] %s30
      %36 = dma.hbm_to_vmem [thread:$0]  %s1, 256, %s31, [#allocation6], 128, 128, 8
    $region9: #{tpu_custom_call.1} parent=1 // pred_fallthru
      _
    // Predicated region
    $region10: #{tpu_custom_call.1} parent=1 // pred_check
      _
    $region11: #{tpu_custom_call.1} parent=1 // pred_check_branch
      %38 = sbr.rel (0) target = $region13
    $region12: #{tpu_custom_call.1} parent=1 // pred_region
      %39 = dma.done [#allocation3], 256
    $region13: #{tpu_custom_call.1} parent=1 // pred_fallthru
      _
    // Predicated region
    $region14: #{tpu_custom_call.1} parent=1 // pred_check
      _
    $region15: #{tpu_custom_call.1} parent=1 // pred_check_branch
      %41 = sbr.rel (0) target = $region17
    $region16: #{tpu_custom_call.1} parent=1 // pred_region
      %42 = dma.done [#allocation6], 256
    $region17: #{tpu_custom_call.1} parent=1 // pred_fallthru
      _
    %v43 = vld [vmem:[#allocation2] sm:$0xff]
    %v44 = vld [vmem:[#allocation2 + $0x8] sm:$0xff]
    %v45 = vld [vmem:[#allocation5] sm:$0xff]
    %v46 = vld [vmem:[#allocation5 + $0x8] sm:$0xff]
    %vm47 = vcmp.ne.f32.partialorder %v45, -1.0
    %vm48 = vcmp.ne.f32.partialorder %v46, -1.0
    %v49 = vsel %vm47, 1, 0
    %v50 = vsel %vm48, 1, 0
    %v51 = vcvt.s32.f32 %v49
    %v52 = vcvt.s32.f32 %v50
    %v53 = vsub.f32 %v43, %v45
    %v54 = vsub.f32 %v44, %v46
    %v55 = vsel %vm47, %v53, 0.0
    %v56 = vsel %vm48, %v54, 0.0
    %v57 = vmul.f32 %v55, %v55
    %v58 = vmul.f32 %v56, %v56
    %v59 = vadd.f32 %v57, %v58
    %v60 = vadd.f32 %v51, %v52
    %61 = vst [vmem:[#allocation7] sm:$0xff] %v59
    %62 = vst [vmem:[#allocation8] sm:$0xff] %v60
    // Predicated region
    $region18: #{tpu_custom_call.1} parent=1 // pred_check
      _
    $region19: #{tpu_custom_call.1} parent=1 // pred_check_branch
      %64 = sbr.rel (0) target = $region21
    $region20: #{tpu_custom_call.1} parent=1 // pred_region
      %s66 = ssub.s32 128, 128
      %67 = vsyncadd [#allocation4], %s66
      %s69 = sshll.u32 [#allocation7], 4
      %s70 = int_to_ptr.vmem [resolvable:$true] %s69
      %72 = dma.vmem_to_hbm [thread:$0]  %s70, 128, %s2, [#allocation4]
    $region21: #{tpu_custom_call.1} parent=1 // pred_fallthru
      _
    // Predicated region
    $region22: #{tpu_custom_call.1} parent=1 // pred_check
      _
    $region23: #{tpu_custom_call.1} parent=1 // pred_check_branch
      %74 = sbr.rel (0) target = $region25
    $region24: #{tpu_custom_call.1} parent=1 // pred_region
      %s76 = ssub.s32 128, 128
      %77 = vsyncadd [#allocation9], %s76
      %s79 = sshll.u32 [#allocation8], 4
      %s80 = int_to_ptr.vmem [resolvable:$true] %s79
      %82 = dma.vmem_to_hbm [thread:$0]  %s80, 128, %s3, [#allocation9]
    $region25: #{tpu_custom_call.1} parent=1 // pred_fallthru
      _
    // Predicated region
    $region26: #{tpu_custom_call.1} parent=1 // pred_check
      _
    $region27: #{tpu_custom_call.1} parent=1 // pred_check_branch
      %84 = sbr.rel (0) target = $region29
    $region28: #{tpu_custom_call.1} parent=1 // pred_region
      %85 = dma.done [#allocation4], 128
    $region29: #{tpu_custom_call.1} parent=1 // pred_fallthru
      _
    // Predicated region
    $region30: #{tpu_custom_call.1} parent=1 // pred_check
      _
    $region31: #{tpu_custom_call.1} parent=1 // pred_check_branch
      %87 = sbr.rel (0) target = $region33
    $region32: #{tpu_custom_call.1} parent=1 // pred_region
      %88 = dma.done [#allocation9], 128
    $region33: #{tpu_custom_call.1} parent=1 // pred_fallthru
      _
    %89 = vsyncpa [#allocation3], 1
    %90 = vsyncpa [#allocation6], 1
    %91 = vsyncpa [#allocation4], 1
    %92 = vsyncpa [#allocation9], 1

</llo_original>
